<compile_context>
chip_gen: v7x
topology: tpu7x:2x2x1
jax: 0.10.0
libtpu: 0.0.40
codegen_flags: <defaults>
</compile_context>

<pallas_src>
import jax
import jax.numpy as jnp
import numpy as np
from jax import lax
from jax.experimental import pallas as pl
from jax.experimental.pallas import tpu as pltpu

N = 6          # number of distance choices (len(select_p))
NEG = -1e30    # python float literal (no captured jnp constants)
UNROLL_MAX = 32  # python-unroll the per-seed loop up to this batch size


def _scalar_argmax(vals):
    """Index of the max of a python list of traced f32 scalars (lowest-index ties).

    Pure scalar-unit work: compares + selects on sregs only.
    """
    best_v = vals[0]
    best_i = 0
    for j in range(1, len(vals)):
        take = vals[j] > best_v
        best_v = jnp.where(take, vals[j], best_v)
        best_i = jnp.where(take, j, best_i)
    return best_i


def _distance_learner_kernel(p_ref, cdf_ref, u_ref, out_ref):
    # p_ref:   SMEM (N,)    float32  select_p parameter
    # cdf_ref: SMEM (N,)    float32  cumsum(softmax(select_p))  (seed-independent)
    # u_ref:   SMEM (B,)    float32  one uniform in [0,1) per seed (keyed by seed % 50)
    # out_ref: SMEM (2*B,)  int32    flat [best_0, second_0, best_1, second_1, ...]
    B = u_ref.shape[0]

    # ---- seed-independent scalar work (hoisted) --------------------------------
    pv = [p_ref[j] for j in range(N)]

    # descending top-3 indices of select_p (stable: lowest index wins ties)
    idx0 = _scalar_argmax(pv)
    pv1 = [jnp.where(idx0 == j, NEG, pv[j]) for j in range(N)]
    idx1 = _scalar_argmax(pv1)
    pv2 = [jnp.where(idx1 == j, NEG, pv1[j]) for j in range(N)]
    idx2 = _scalar_argmax(pv2)

    # first N-1 CDF thresholds (the last one is 1.0 and never needed since u < 1)
    cv = [cdf_ref[j] for j in range(N - 1)]

    # ---- per-seed work: inverse-CDF categorical sample, pure scalar unit -------
    def per_seed(i):
        u = u_ref[i]
        best = (u >= cv[0]).astype(jnp.int32)
        for j in range(1, N - 1):
            best = best + (u >= cv[j]).astype(jnp.int32)
        second = jnp.where(idx1 != best, idx1, idx2)
        out_ref[2 * i] = best
        out_ref[2 * i + 1] = second.astype(jnp.int32)

    if B <= UNROLL_MAX:
        for i in range(B):
            per_seed(i)
    else:
        def body(i, carry):
            per_seed(i)
            return carry
        lax.fori_loop(0, B, body, 0)


def distance_learner_forward_batch(select_p, seeds, base_key=None):
    """Run the Distance_learner forward for a batch of seeds in ONE pallas_call.

    Returns (idx, psel):
      idx[b]  = [best_index, second_index]   (int32)
      psel[b] = [p[best],    p[second]]      (float32, exactly [1.0, 0.0] per row)
    """
    seeds = jnp.asarray(seeds, dtype=jnp.int32).reshape(-1)
    select_p = jnp.asarray(select_p, dtype=jnp.float32).reshape(-1)
    B = int(seeds.shape[0])

    if base_key is None:
        base_key = jax.random.PRNGKey(1234)

    # seed % 50 determines the sample (same residue -> same sample), as in the module.
    residues = jnp.mod(seeds, 50)
    uniforms = jax.vmap(
        lambda r: jax.random.uniform(jax.random.fold_in(base_key, r), dtype=jnp.float32)
    )(residues)

    # seed-independent: softmax(select_p) CDF (hoisted out of the kernel).
    probs = jax.nn.softmax(select_p)
    cdf = jnp.cumsum(probs).astype(jnp.float32)

    flat_idx = pl.pallas_call(
        _distance_learner_kernel,
        out_shape=jax.ShapeDtypeStruct((2 * B,), jnp.int32),
        in_specs=[
            pl.BlockSpec(memory_space=pltpu.SMEM),   # select_p
            pl.BlockSpec(memory_space=pltpu.SMEM),   # cdf
            pl.BlockSpec(memory_space=pltpu.SMEM),   # uniforms
        ],
        out_specs=pl.BlockSpec(memory_space=pltpu.SMEM),
    )(select_p, cdf, uniforms)

    idx = flat_idx.reshape(B, 2)
    # hard one-hot => p[best] == 1.0 and p[second] == 0.0 exactly (second != best)
    psel = jnp.concatenate(
        [jnp.ones((B, 1), jnp.float32), jnp.zeros((B, 1), jnp.float32)], axis=1
    )
    return idx, psel


def distance_learner_forward(select_p, seed):
    """Single-seed forward, same interface as Distance_learner.forward(seed)."""
    idx, psel = distance_learner_forward_batch(
        select_p, jnp.asarray([seed], dtype=jnp.int32)
    )
    best_index = idx[0, 0]
    second_index = idx[0, 1]
    p_select = [psel[0, 0], psel[0, 1]]
    return best_index, second_index, p_select


if __name__ == "__main__":
    # Parameter init exactly as in the module's __init__.
    select_p = jnp.full((N,), 0.0001, dtype=jnp.float32).at[3].set(0.1)

    # Deterministic example seeds.
    key = jax.random.PRNGKey(0)
    seeds = jax.random.randint(key, (8,), 0, 1000, dtype=jnp.int32)

    # Batched call (amortizes launch overhead over 8 forwards).
    idx, psel = distance_learner_forward_batch(select_p, seeds)
    jax.block_until_ready((idx, psel))

    # Single-seed call (module-equivalent interface).
    best_index, second_index, p_select = distance_learner_forward(select_p, int(seeds[0]))
    jax.block_until_ready((best_index, second_index, p_select[0], p_select[1]))

    # ---- sanity checks ---------------------------------------------------------
    p_np = np.asarray(select_p)
    order = np.argsort(-p_np, kind="stable")        # descending, lowest-index ties
    idx_np = np.asarray(idx)
    psel_np = np.asarray(psel)
    for b in range(idx_np.shape[0]):
        best_b, second_b = int(idx_np[b, 0]), int(idx_np[b, 1])
        assert 0 <= best_b < N and 0 <= second_b < N
        assert best_b != second_b
        expected_second = int(order[1]) if int(order[1]) != best_b else int(order[2])
        assert second_b == expected_second
        assert abs(float(psel_np[b, 0]) - 1.0) < 1e-6
        assert abs(float(psel_np[b, 1]) - 0.0) < 1e-6

    # single-seed result is bit-identical to row 0 of the batched call
    assert int(best_index) == int(idx_np[0, 0])
    assert int(second_index) == int(idx_np[0, 1])
    assert abs(float(p_select[0]) - 1.0) < 1e-6
    assert abs(float(p_select[1])) < 1e-6

    # same (seed % 50) residue -> identical sample, as with torch.manual_seed(seed % 50)
    s0 = int(seeds[0])
    idx_pair, _ = distance_learner_forward_batch(
        select_p, jnp.asarray([s0, s0 + 50], dtype=jnp.int32)
    )
    idx_pair = np.asarray(jax.block_until_ready(idx_pair))
    assert int(idx_pair[0, 0]) == int(idx_pair[1, 0])
    assert int(idx_pair[0, 1]) == int(idx_pair[1, 1])

    print("KERNEL_OK")
</pallas_src>

<mosaic_0001>
module attributes {stable_mosaic.version = 11 : i64} {
  func.func @_distance_learner_kernel(%arg0: memref<6xf32, #tpu.memory_space<smem>>, %arg1: memref<6xf32, #tpu.memory_space<smem>>, %arg2: memref<8xf32, #tpu.memory_space<smem>>, %arg3: memref<16xi32, #tpu.memory_space<smem>>) attributes {dimension_semantics = [], scalar_prefetch = 0 : i64, scratch_operands = 0 : i64, tpu.core_type = #tpu.core_type<tc>} {
    %c0 = arith.constant 0 : index
    %0 = memref.load %arg0[%c0] : memref<6xf32, #tpu.memory_space<smem>>
    %c1 = arith.constant 1 : index
    %1 = memref.load %arg0[%c1] : memref<6xf32, #tpu.memory_space<smem>>
    %c2 = arith.constant 2 : index
    %2 = memref.load %arg0[%c2] : memref<6xf32, #tpu.memory_space<smem>>
    %c3 = arith.constant 3 : index
    %3 = memref.load %arg0[%c3] : memref<6xf32, #tpu.memory_space<smem>>
    %c4 = arith.constant 4 : index
    %4 = memref.load %arg0[%c4] : memref<6xf32, #tpu.memory_space<smem>>
    %c5 = arith.constant 5 : index
    %5 = memref.load %arg0[%c5] : memref<6xf32, #tpu.memory_space<smem>>
    %6 = arith.cmpf ogt, %1, %0 : f32
    %7 = arith.select %6, %1, %0 : f32
    %c1_i32 = arith.constant 1 : i32
    %c0_i32 = arith.constant 0 : i32
    %8 = arith.select %6, %c1_i32, %c0_i32 : i32
    %9 = arith.cmpf ogt, %2, %7 : f32
    %10 = arith.select %9, %2, %7 : f32
    %c2_i32 = arith.constant 2 : i32
    %11 = arith.select %9, %c2_i32, %8 : i32
    %12 = arith.cmpf ogt, %3, %10 : f32
    %13 = arith.select %12, %3, %10 : f32
    %c3_i32 = arith.constant 3 : i32
    %14 = arith.select %12, %c3_i32, %11 : i32
    %15 = arith.cmpf ogt, %4, %13 : f32
    %16 = arith.select %15, %4, %13 : f32
    %c4_i32 = arith.constant 4 : i32
    %17 = arith.select %15, %c4_i32, %14 : i32
    %18 = arith.cmpf ogt, %5, %16 : f32
    %c5_i32 = arith.constant 5 : i32
    %19 = arith.select %18, %c5_i32, %17 : i32
    %c0_i32_0 = arith.constant 0 : i32
    %20 = arith.cmpi eq, %19, %c0_i32_0 : i32
    %cst = arith.constant -1.000000e+30 : f32
    %21 = arith.select %20, %cst, %0 : f32
    %c1_i32_1 = arith.constant 1 : i32
    %22 = arith.cmpi eq, %19, %c1_i32_1 : i32
    %cst_2 = arith.constant -1.000000e+30 : f32
    %23 = arith.select %22, %cst_2, %1 : f32
    %c2_i32_3 = arith.constant 2 : i32
    %24 = arith.cmpi eq, %19, %c2_i32_3 : i32
    %cst_4 = arith.constant -1.000000e+30 : f32
    %25 = arith.select %24, %cst_4, %2 : f32
    %c3_i32_5 = arith.constant 3 : i32
    %26 = arith.cmpi eq, %19, %c3_i32_5 : i32
    %cst_6 = arith.constant -1.000000e+30 : f32
    %27 = arith.select %26, %cst_6, %3 : f32
    %c4_i32_7 = arith.constant 4 : i32
    %28 = arith.cmpi eq, %19, %c4_i32_7 : i32
    %cst_8 = arith.constant -1.000000e+30 : f32
    %29 = arith.select %28, %cst_8, %4 : f32
    %c5_i32_9 = arith.constant 5 : i32
    %30 = arith.cmpi eq, %19, %c5_i32_9 : i32
    %cst_10 = arith.constant -1.000000e+30 : f32
    %31 = arith.select %30, %cst_10, %5 : f32
    %32 = arith.cmpf ogt, %23, %21 : f32
    %33 = arith.select %32, %23, %21 : f32
    %c1_i32_11 = arith.constant 1 : i32
    %c0_i32_12 = arith.constant 0 : i32
    %34 = arith.select %32, %c1_i32_11, %c0_i32_12 : i32
    %35 = arith.cmpf ogt, %25, %33 : f32
    %36 = arith.select %35, %25, %33 : f32
    %c2_i32_13 = arith.constant 2 : i32
    %37 = arith.select %35, %c2_i32_13, %34 : i32
    %38 = arith.cmpf ogt, %27, %36 : f32
    %39 = arith.select %38, %27, %36 : f32
    %c3_i32_14 = arith.constant 3 : i32
    %40 = arith.select %38, %c3_i32_14, %37 : i32
    %41 = arith.cmpf ogt, %29, %39 : f32
    %42 = arith.select %41, %29, %39 : f32
    %c4_i32_15 = arith.constant 4 : i32
    %43 = arith.select %41, %c4_i32_15, %40 : i32
    %44 = arith.cmpf ogt, %31, %42 : f32
    %c5_i32_16 = arith.constant 5 : i32
    %45 = arith.select %44, %c5_i32_16, %43 : i32
    %c0_i32_17 = arith.constant 0 : i32
    %46 = arith.cmpi eq, %45, %c0_i32_17 : i32
    %cst_18 = arith.constant -1.000000e+30 : f32
    %47 = arith.select %46, %cst_18, %21 : f32
    %c1_i32_19 = arith.constant 1 : i32
    %48 = arith.cmpi eq, %45, %c1_i32_19 : i32
    %cst_20 = arith.constant -1.000000e+30 : f32
    %49 = arith.select %48, %cst_20, %23 : f32
    %c2_i32_21 = arith.constant 2 : i32
    %50 = arith.cmpi eq, %45, %c2_i32_21 : i32
    %cst_22 = arith.constant -1.000000e+30 : f32
    %51 = arith.select %50, %cst_22, %25 : f32
    %c3_i32_23 = arith.constant 3 : i32
    %52 = arith.cmpi eq, %45, %c3_i32_23 : i32
    %cst_24 = arith.constant -1.000000e+30 : f32
    %53 = arith.select %52, %cst_24, %27 : f32
    %c4_i32_25 = arith.constant 4 : i32
    %54 = arith.cmpi eq, %45, %c4_i32_25 : i32
    %cst_26 = arith.constant -1.000000e+30 : f32
    %55 = arith.select %54, %cst_26, %29 : f32
    %c5_i32_27 = arith.constant 5 : i32
    %56 = arith.cmpi eq, %45, %c5_i32_27 : i32
    %cst_28 = arith.constant -1.000000e+30 : f32
    %57 = arith.select %56, %cst_28, %31 : f32
    %58 = arith.cmpf ogt, %49, %47 : f32
    %59 = arith.select %58, %49, %47 : f32
    %c1_i32_29 = arith.constant 1 : i32
    %c0_i32_30 = arith.constant 0 : i32
    %60 = arith.select %58, %c1_i32_29, %c0_i32_30 : i32
    %61 = arith.cmpf ogt, %51, %59 : f32
    %62 = arith.select %61, %51, %59 : f32
    %c2_i32_31 = arith.constant 2 : i32
    %63 = arith.select %61, %c2_i32_31, %60 : i32
    %64 = arith.cmpf ogt, %53, %62 : f32
    %65 = arith.select %64, %53, %62 : f32
    %c3_i32_32 = arith.constant 3 : i32
    %66 = arith.select %64, %c3_i32_32, %63 : i32
    %67 = arith.cmpf ogt, %55, %65 : f32
    %68 = arith.select %67, %55, %65 : f32
    %c4_i32_33 = arith.constant 4 : i32
    %69 = arith.select %67, %c4_i32_33, %66 : i32
    %70 = arith.cmpf ogt, %57, %68 : f32
    %c5_i32_34 = arith.constant 5 : i32
    %71 = arith.select %70, %c5_i32_34, %69 : i32
    %c0_35 = arith.constant 0 : index
    %72 = memref.load %arg1[%c0_35] : memref<6xf32, #tpu.memory_space<smem>>
    %c1_36 = arith.constant 1 : index
    %73 = memref.load %arg1[%c1_36] : memref<6xf32, #tpu.memory_space<smem>>
    %c2_37 = arith.constant 2 : index
    %74 = memref.load %arg1[%c2_37] : memref<6xf32, #tpu.memory_space<smem>>
    %c3_38 = arith.constant 3 : index
    %75 = memref.load %arg1[%c3_38] : memref<6xf32, #tpu.memory_space<smem>>
    %c4_39 = arith.constant 4 : index
    %76 = memref.load %arg1[%c4_39] : memref<6xf32, #tpu.memory_space<smem>>
    %c0_40 = arith.constant 0 : index
    %77 = memref.load %arg2[%c0_40] : memref<8xf32, #tpu.memory_space<smem>>
    %78 = arith.cmpf oge, %77, %72 : f32
    %79 = arith.extui %78 : i1 to i32
    %80 = arith.cmpf oge, %77, %73 : f32
    %81 = arith.extui %80 : i1 to i32
    %82 = arith.addi %79, %81 : i32
    %83 = arith.cmpf oge, %77, %74 : f32
    %84 = arith.extui %83 : i1 to i32
    %85 = arith.addi %82, %84 : i32
    %86 = arith.cmpf oge, %77, %75 : f32
    %87 = arith.extui %86 : i1 to i32
    %88 = arith.addi %85, %87 : i32
    %89 = arith.cmpf oge, %77, %76 : f32
    %90 = arith.extui %89 : i1 to i32
    %91 = arith.addi %88, %90 : i32
    %92 = arith.cmpi ne, %45, %91 : i32
    %93 = arith.select %92, %45, %71 : i32
    %c0_41 = arith.constant 0 : index
    %94 = memref.load %arg3[%c0_41] : memref<16xi32, #tpu.memory_space<smem>>
    memref.store %91, %arg3[%c0_41] : memref<16xi32, #tpu.memory_space<smem>>
    %c1_42 = arith.constant 1 : index
    %95 = memref.load %arg3[%c1_42] : memref<16xi32, #tpu.memory_space<smem>>
    memref.store %93, %arg3[%c1_42] : memref<16xi32, #tpu.memory_space<smem>>
    %c1_43 = arith.constant 1 : index
    %96 = memref.load %arg2[%c1_43] : memref<8xf32, #tpu.memory_space<smem>>
    %97 = arith.cmpf oge, %96, %72 : f32
    %98 = arith.extui %97 : i1 to i32
    %99 = arith.cmpf oge, %96, %73 : f32
    %100 = arith.extui %99 : i1 to i32
    %101 = arith.addi %98, %100 : i32
    %102 = arith.cmpf oge, %96, %74 : f32
    %103 = arith.extui %102 : i1 to i32
    %104 = arith.addi %101, %103 : i32
    %105 = arith.cmpf oge, %96, %75 : f32
    %106 = arith.extui %105 : i1 to i32
    %107 = arith.addi %104, %106 : i32
    %108 = arith.cmpf oge, %96, %76 : f32
    %109 = arith.extui %108 : i1 to i32
    %110 = arith.addi %107, %109 : i32
    %111 = arith.cmpi ne, %45, %110 : i32
    %112 = arith.select %111, %45, %71 : i32
    %c2_44 = arith.constant 2 : index
    %113 = memref.load %arg3[%c2_44] : memref<16xi32, #tpu.memory_space<smem>>
    memref.store %110, %arg3[%c2_44] : memref<16xi32, #tpu.memory_space<smem>>
    %c3_45 = arith.constant 3 : index
    %114 = memref.load %arg3[%c3_45] : memref<16xi32, #tpu.memory_space<smem>>
    memref.store %112, %arg3[%c3_45] : memref<16xi32, #tpu.memory_space<smem>>
    %c2_46 = arith.constant 2 : index
    %115 = memref.load %arg2[%c2_46] : memref<8xf32, #tpu.memory_space<smem>>
    %116 = arith.cmpf oge, %115, %72 : f32
    %117 = arith.extui %116 : i1 to i32
    %118 = arith.cmpf oge, %115, %73 : f32
    %119 = arith.extui %118 : i1 to i32
    %120 = arith.addi %117, %119 : i32
    %121 = arith.cmpf oge, %115, %74 : f32
    %122 = arith.extui %121 : i1 to i32
    %123 = arith.addi %120, %122 : i32
    %124 = arith.cmpf oge, %115, %75 : f32
    %125 = arith.extui %124 : i1 to i32
    %126 = arith.addi %123, %125 : i32
    %127 = arith.cmpf oge, %115, %76 : f32
    %128 = arith.extui %127 : i1 to i32
    %129 = arith.addi %126, %128 : i32
    %130 = arith.cmpi ne, %45, %129 : i32
    %131 = arith.select %130, %45, %71 : i32
    %c4_47 = arith.constant 4 : index
    %132 = memref.load %arg3[%c4_47] : memref<16xi32, #tpu.memory_space<smem>>
    memref.store %129, %arg3[%c4_47] : memref<16xi32, #tpu.memory_space<smem>>
    %c5_48 = arith.constant 5 : index
    %133 = memref.load %arg3[%c5_48] : memref<16xi32, #tpu.memory_space<smem>>
    memref.store %131, %arg3[%c5_48] : memref<16xi32, #tpu.memory_space<smem>>
    %c3_49 = arith.constant 3 : index
    %134 = memref.load %arg2[%c3_49] : memref<8xf32, #tpu.memory_space<smem>>
    %135 = arith.cmpf oge, %134, %72 : f32
    %136 = arith.extui %135 : i1 to i32
    %137 = arith.cmpf oge, %134, %73 : f32
    %138 = arith.extui %137 : i1 to i32
    %139 = arith.addi %136, %138 : i32
    %140 = arith.cmpf oge, %134, %74 : f32
    %141 = arith.extui %140 : i1 to i32
    %142 = arith.addi %139, %141 : i32
    %143 = arith.cmpf oge, %134, %75 : f32
    %144 = arith.extui %143 : i1 to i32
    %145 = arith.addi %142, %144 : i32
    %146 = arith.cmpf oge, %134, %76 : f32
    %147 = arith.extui %146 : i1 to i32
    %148 = arith.addi %145, %147 : i32
    %149 = arith.cmpi ne, %45, %148 : i32
    %150 = arith.select %149, %45, %71 : i32
    %c6 = arith.constant 6 : index
    %151 = memref.load %arg3[%c6] : memref<16xi32, #tpu.memory_space<smem>>
    memref.store %148, %arg3[%c6] : memref<16xi32, #tpu.memory_space<smem>>
    %c7 = arith.constant 7 : index
    %152 = memref.load %arg3[%c7] : memref<16xi32, #tpu.memory_space<smem>>
    memref.store %150, %arg3[%c7] : memref<16xi32, #tpu.memory_space<smem>>
    %c4_50 = arith.constant 4 : index
    %153 = memref.load %arg2[%c4_50] : memref<8xf32, #tpu.memory_space<smem>>
    %154 = arith.cmpf oge, %153, %72 : f32
    %155 = arith.extui %154 : i1 to i32
    %156 = arith.cmpf oge, %153, %73 : f32
    %157 = arith.extui %156 : i1 to i32
    %158 = arith.addi %155, %157 : i32
    %159 = arith.cmpf oge, %153, %74 : f32
    %160 = arith.extui %159 : i1 to i32
    %161 = arith.addi %158, %160 : i32
    %162 = arith.cmpf oge, %153, %75 : f32
    %163 = arith.extui %162 : i1 to i32
    %164 = arith.addi %161, %163 : i32
    %165 = arith.cmpf oge, %153, %76 : f32
    %166 = arith.extui %165 : i1 to i32
    %167 = arith.addi %164, %166 : i32
    %168 = arith.cmpi ne, %45, %167 : i32
    %169 = arith.select %168, %45, %71 : i32
    %c8 = arith.constant 8 : index
    %170 = memref.load %arg3[%c8] : memref<16xi32, #tpu.memory_space<smem>>
    memref.store %167, %arg3[%c8] : memref<16xi32, #tpu.memory_space<smem>>
    %c9 = arith.constant 9 : index
    %171 = memref.load %arg3[%c9] : memref<16xi32, #tpu.memory_space<smem>>
    memref.store %169, %arg3[%c9] : memref<16xi32, #tpu.memory_space<smem>>
    %c5_51 = arith.constant 5 : index
    %172 = memref.load %arg2[%c5_51] : memref<8xf32, #tpu.memory_space<smem>>
    %173 = arith.cmpf oge, %172, %72 : f32
    %174 = arith.extui %173 : i1 to i32
    %175 = arith.cmpf oge, %172, %73 : f32
    %176 = arith.extui %175 : i1 to i32
    %177 = arith.addi %174, %176 : i32
    %178 = arith.cmpf oge, %172, %74 : f32
    %179 = arith.extui %178 : i1 to i32
    %180 = arith.addi %177, %179 : i32
    %181 = arith.cmpf oge, %172, %75 : f32
    %182 = arith.extui %181 : i1 to i32
    %183 = arith.addi %180, %182 : i32
    %184 = arith.cmpf oge, %172, %76 : f32
    %185 = arith.extui %184 : i1 to i32
    %186 = arith.addi %183, %185 : i32
    %187 = arith.cmpi ne, %45, %186 : i32
    %188 = arith.select %187, %45, %71 : i32
    %c10 = arith.constant 10 : index
    %189 = memref.load %arg3[%c10] : memref<16xi32, #tpu.memory_space<smem>>
    memref.store %186, %arg3[%c10] : memref<16xi32, #tpu.memory_space<smem>>
    %c11 = arith.constant 11 : index
    %190 = memref.load %arg3[%c11] : memref<16xi32, #tpu.memory_space<smem>>
    memref.store %188, %arg3[%c11] : memref<16xi32, #tpu.memory_space<smem>>
    %c6_52 = arith.constant 6 : index
    %191 = memref.load %arg2[%c6_52] : memref<8xf32, #tpu.memory_space<smem>>
    %192 = arith.cmpf oge, %191, %72 : f32
    %193 = arith.extui %192 : i1 to i32
    %194 = arith.cmpf oge, %191, %73 : f32
    %195 = arith.extui %194 : i1 to i32
    %196 = arith.addi %193, %195 : i32
    %197 = arith.cmpf oge, %191, %74 : f32
    %198 = arith.extui %197 : i1 to i32
    %199 = arith.addi %196, %198 : i32
    %200 = arith.cmpf oge, %191, %75 : f32
    %201 = arith.extui %200 : i1 to i32
    %202 = arith.addi %199, %201 : i32
    %203 = arith.cmpf oge, %191, %76 : f32
    %204 = arith.extui %203 : i1 to i32
    %205 = arith.addi %202, %204 : i32
    %206 = arith.cmpi ne, %45, %205 : i32
    %207 = arith.select %206, %45, %71 : i32
    %c12 = arith.constant 12 : index
    %208 = memref.load %arg3[%c12] : memref<16xi32, #tpu.memory_space<smem>>
    memref.store %205, %arg3[%c12] : memref<16xi32, #tpu.memory_space<smem>>
    %c13 = arith.constant 13 : index
    %209 = memref.load %arg3[%c13] : memref<16xi32, #tpu.memory_space<smem>>
    memref.store %207, %arg3[%c13] : memref<16xi32, #tpu.memory_space<smem>>
    %c7_53 = arith.constant 7 : index
    %210 = memref.load %arg2[%c7_53] : memref<8xf32, #tpu.memory_space<smem>>
    %211 = arith.cmpf oge, %210, %72 : f32
    %212 = arith.extui %211 : i1 to i32
    %213 = arith.cmpf oge, %210, %73 : f32
    %214 = arith.extui %213 : i1 to i32
    %215 = arith.addi %212, %214 : i32
    %216 = arith.cmpf oge, %210, %74 : f32
    %217 = arith.extui %216 : i1 to i32
    %218 = arith.addi %215, %217 : i32
    %219 = arith.cmpf oge, %210, %75 : f32
    %220 = arith.extui %219 : i1 to i32
    %221 = arith.addi %218, %220 : i32
    %222 = arith.cmpf oge, %210, %76 : f32
    %223 = arith.extui %222 : i1 to i32
    %224 = arith.addi %221, %223 : i32
    %225 = arith.cmpi ne, %45, %224 : i32
    %226 = arith.select %225, %45, %71 : i32
    %c14 = arith.constant 14 : index
    %227 = memref.load %arg3[%c14] : memref<16xi32, #tpu.memory_space<smem>>
    memref.store %224, %arg3[%c14] : memref<16xi32, #tpu.memory_space<smem>>
    %c15 = arith.constant 15 : index
    %228 = memref.load %arg3[%c15] : memref<16xi32, #tpu.memory_space<smem>>
    memref.store %226, %arg3[%c15] : memref<16xi32, #tpu.memory_space<smem>>
    return
  }
}

</mosaic_0001>

<llo_original>
// kernel: tpu_custom_call.1
$region0: #{tpu_custom_call.1}
  #allocation0 [shape = 'u32[]', space=smem, size = 0x4, offset = 0x4, fixed_abs, tag = 'smem constant byte address 0x4 - core index']
  #allocation1 [shape = 'u32[144,128]{1,0:T(1,128)}', space=vmem, size = 0x12000, scoped, tag = 'internal scratch']
  %s0 = inlined_call_operand.hbm [shape: f32[6], index: 0, kind: input, shape index: {}]
  %s1 = inlined_call_operand.vmem [shape: f32[6], index: 1, kind: input, shape index: {}]
  %s2 = inlined_call_operand.vmem [shape: f32[8], index: 2, kind: input, shape index: {}]
  %s3 = inlined_call_operand.hbm [shape: s32[16], index: 3, kind: output, shape index: {}]
  %s4 = sld [smem:[#allocation0]]
  $region34: #{tpu_custom_call.1} parent=0
    _
  %s6 = ssub.s32 1, %s4
  %s7 = scalar_select 0, %s6, %s4
  $region1: #{tpu_custom_call.1} parent=0
    #allocation2 [shape = 'u8[512]{0}', space=smem, size = 0x200, scoped, tag = 'input window, operand 0, single buffered']
    #allocation3 [shape = 's32[1]{0}', space=sflag, size = 0x4, scoped, tag = 'scoped memory for tpu_custom_call.1']
    #allocation4 [shape = 's32[1]{0}', space=sflag, size = 0x4, scoped, tag = 'scoped memory for tpu_custom_call.1']
    #allocation5 [shape = 's32[1]{0}', space=sflag, size = 0x4, scoped, tag = 'scoped memory for tpu_custom_call.1']
    #allocation6 [shape = 'u8[512]{0}', space=smem, size = 0x200, scoped, tag = 'input window, operand 1, single buffered']
    #allocation7 [shape = 'u8[512]{0}', space=smem, size = 0x200, scoped, tag = 'input window, operand 2, single buffered']
    #allocation8 [shape = 's32[1]{0}', space=sflag, size = 0x4, scoped, tag = 'scoped memory for tpu_custom_call.1']
    #allocation9 [shape = 'u8[512]{0}', space=smem, size = 0x200, scoped, tag = 'output window, operand 0, single buffered']
    %8 = vsyncpa [#allocation3], 0
    %9 = vsyncpa [#allocation5], 0
    %10 = vsyncpa [#allocation8], 0
    %11 = vsyncpa [#allocation4], 0
    // Predicated region
    $region2: #{tpu_custom_call.1} parent=1 // pred_check
      _
    $region3: #{tpu_custom_call.1} parent=1 // pred_check_branch
      %13 = sbr.rel (0) target = $region5
    $region4: #{tpu_custom_call.1} parent=1 // pred_region
      %s15 = ssub.s32 16, 16
      %16 = vsyncadd [#allocation3], %s15
      %19 = dma.hbm_to_smem %s0, 16, [#allocation2], [#allocation3]
    $region5: #{tpu_custom_call.1} parent=1 // pred_fallthru
      _
    // Predicated region
    $region6: #{tpu_custom_call.1} parent=1 // pred_check
      _
    $region7: #{tpu_custom_call.1} parent=1 // pred_check_branch
      %21 = sbr.rel (0) target = $region9
    $region8: #{tpu_custom_call.1} parent=1 // pred_region
      %s23 = ssub.s32 16, 16
      %24 = vsyncadd [#allocation5], %s23
      %s26 = sshll.u32 %s1, 4
      %s27 = int_to_ptr.vmem [resolvable:$true] %s26
      %29 = dma.vmem_to_smem %s27, 16, [#allocation6], [#allocation5]
    $region9: #{tpu_custom_call.1} parent=1 // pred_fallthru
      _
    // Predicated region
    $region10: #{tpu_custom_call.1} parent=1 // pred_check
      _
    $region11: #{tpu_custom_call.1} parent=1 // pred_check_branch
      %31 = sbr.rel (0) target = $region13
    $region12: #{tpu_custom_call.1} parent=1 // pred_region
      %s33 = ssub.s32 16, 16
      %34 = vsyncadd [#allocation8], %s33
      %s36 = sshll.u32 %s2, 4
      %s37 = int_to_ptr.vmem [resolvable:$true] %s36
      %39 = dma.vmem_to_smem %s37, 16, [#allocation7], [#allocation8]
    $region13: #{tpu_custom_call.1} parent=1 // pred_fallthru
      _
    // Predicated region
    $region14: #{tpu_custom_call.1} parent=1 // pred_check
      _
    $region15: #{tpu_custom_call.1} parent=1 // pred_check_branch
      %41 = sbr.rel (0) target = $region17
    $region16: #{tpu_custom_call.1} parent=1 // pred_region
      %42 = dma.done [#allocation3], 16
    $region17: #{tpu_custom_call.1} parent=1 // pred_fallthru
      _
    // Predicated region
    $region18: #{tpu_custom_call.1} parent=1 // pred_check
      _
    $region19: #{tpu_custom_call.1} parent=1 // pred_check_branch
      %44 = sbr.rel (0) target = $region21
    $region20: #{tpu_custom_call.1} parent=1 // pred_region
      %45 = dma.done [#allocation5], 16
    $region21: #{tpu_custom_call.1} parent=1 // pred_fallthru
      _
    // Predicated region
    $region22: #{tpu_custom_call.1} parent=1 // pred_check
      _
    $region23: #{tpu_custom_call.1} parent=1 // pred_check_branch
      %47 = sbr.rel (0) target = $region25
    $region24: #{tpu_custom_call.1} parent=1 // pred_region
      %48 = dma.done [#allocation8], 16
    $region25: #{tpu_custom_call.1} parent=1 // pred_fallthru
      _
    %49 = sfence
    %s50 = sld [smem:[#allocation2]]
    %s51 = sld [smem:[#allocation2 + $0x1]]
    %s52 = sld [smem:[#allocation2 + $0x2]]
    %s53 = sld [smem:[#allocation2 + $0x3]]
    %s54 = sld [smem:[#allocation2 + $0x4]]
    %s55 = sld [smem:[#allocation2 + $0x5]]
    %p56 = scmp.gt.f32.partialorder %s51, %s50
    %s57 = scalar_select %p56, %s51, %s50
    %s58 = scalar_select %p56, 1, 0
    %p59 = scmp.gt.f32.partialorder %s52, %s57
    %s60 = scalar_select %p59, %s52, %s57
    %s61 = scalar_select %p59, 2, %s58
    %p62 = scmp.gt.f32.partialorder %s53, %s60
    %s63 = scalar_select %p62, %s53, %s60
    %s64 = scalar_select %p62, 3, %s61
    %p65 = scmp.gt.f32.partialorder %s54, %s63
    %s66 = scalar_select %p65, %s54, %s63
    %s67 = scalar_select %p65, 4, %s64
    %p68 = scmp.gt.f32.partialorder %s55, %s66
    %s69 = scalar_select %p68, 5, %s67
    %p70 = scmp.eq.s32.totalorder %s69, 0
    %s71 = scalar_select %p70, -1e+30, %s50
    %p72 = scmp.eq.s32.totalorder %s69, 1
    %s73 = scalar_select %p72, -1e+30, %s51
    %p74 = scmp.eq.s32.totalorder %s69, 2
    %s75 = scalar_select %p74, -1e+30, %s52
    %p76 = scmp.eq.s32.totalorder %s69, 3
    %s77 = scalar_select %p76, -1e+30, %s53
    %p78 = scmp.eq.s32.totalorder %s69, 4
    %s79 = scalar_select %p78, -1e+30, %s54
    %p80 = scmp.eq.s32.totalorder %s69, 5
    %s81 = scalar_select %p80, -1e+30, %s55
    %p82 = scmp.gt.f32.partialorder %s73, %s71
    %s83 = scalar_select %p82, %s73, %s71
    %s84 = scalar_select %p82, 1, 0
    %p85 = scmp.gt.f32.partialorder %s75, %s83
    %s86 = scalar_select %p85, %s75, %s83
    %s87 = scalar_select %p85, 2, %s84
    %p88 = scmp.gt.f32.partialorder %s77, %s86
    %s89 = scalar_select %p88, %s77, %s86
    %s90 = scalar_select %p88, 3, %s87
    %p91 = scmp.gt.f32.partialorder %s79, %s89
    %s92 = scalar_select %p91, %s79, %s89
    %s93 = scalar_select %p91, 4, %s90
    %p94 = scmp.gt.f32.partialorder %s81, %s92
    %s95 = scalar_select %p94, 5, %s93
    %p96 = scmp.eq.s32.totalorder %s95, 0
    %s97 = scalar_select %p96, -1e+30, %s71
    %p98 = scmp.eq.s32.totalorder %s95, 1
    %s99 = scalar_select %p98, -1e+30, %s73
    %p100 = scmp.eq.s32.totalorder %s95, 2
    %s101 = scalar_select %p100, -1e+30, %s75
    %p102 = scmp.eq.s32.totalorder %s95, 3
    %s103 = scalar_select %p102, -1e+30, %s77
    %p104 = scmp.eq.s32.totalorder %s95, 4
    %s105 = scalar_select %p104, -1e+30, %s79
    %p106 = scmp.eq.s32.totalorder %s95, 5
    %s107 = scalar_select %p106, -1e+30, %s81
    %p108 = scmp.gt.f32.partialorder %s99, %s97
    %s109 = scalar_select %p108, %s99, %s97
    %s110 = scalar_select %p108, 1, 0
    %p111 = scmp.gt.f32.partialorder %s101, %s109
    %s112 = scalar_select %p111, %s101, %s109
    %s113 = scalar_select %p111, 2, %s110
    %p114 = scmp.gt.f32.partialorder %s103, %s112
    %s115 = scalar_select %p114, %s103, %s112
    %s116 = scalar_select %p114, 3, %s113
    %p117 = scmp.gt.f32.partialorder %s105, %s115
    %s118 = scalar_select %p117, %s105, %s115
    %s119 = scalar_select %p117, 4, %s116
    %p120 = scmp.gt.f32.partialorder %s107, %s118
    %s121 = scalar_select %p120, 5, %s119
    %s122 = sld [smem:[#allocation6]]
    %s123 = sld [smem:[#allocation6 + $0x1]]
    %s124 = sld [smem:[#allocation6 + $0x2]]
    %s125 = sld [smem:[#allocation6 + $0x3]]
    %s126 = sld [smem:[#allocation6 + $0x4]]
    %s127 = sld [smem:[#allocation7]]
    %p128 = scmp.ge.f32.partialorder %s127, %s122
    %s129 = scalar_select %p128, 1, 0
    %p130 = scmp.ge.f32.partialorder %s127, %s123
    %s131 = scalar_select %p130, 1, 0
    %s132 = sadd.s32 %s129, %s131
    %p133 = scmp.ge.f32.partialorder %s127, %s124
    %s134 = scalar_select %p133, 1, 0
    %s135 = sadd.s32 %s132, %s134
    %p136 = scmp.ge.f32.partialorder %s127, %s125
    %s137 = scalar_select %p136, 1, 0
    %s138 = sadd.s32 %s135, %s137
    %p139 = scmp.ge.f32.partialorder %s127, %s126
    %s140 = scalar_select %p139, 1, 0
    %s141 = sadd.s32 %s138, %s140
    %p142 = scmp.ne.s32.totalorder %s95, %s141
    %s143 = scalar_select %p142, %s95, %s121
    %s144 = scalar_lea.smem [#allocation9], 0
    %145 = sst [smem:[%s144]] %s141
    %s146 = scalar_lea.smem [#allocation9], 1
    %147 = sst [smem:[%s146]] %s143
    %s148 = sld [smem:[#allocation7 + $0x1]]
    %p149 = scmp.ge.f32.partialorder %s148, %s122
    %s150 = scalar_select %p149, 1, 0
    %p151 = scmp.ge.f32.partialorder %s148, %s123
    %s152 = scalar_select %p151, 1, 0
    %s153 = sadd.s32 %s150, %s152
    %p154 = scmp.ge.f32.partialorder %s148, %s124
    %s155 = scalar_select %p154, 1, 0
    %s156 = sadd.s32 %s153, %s155
    %p157 = scmp.ge.f32.partialorder %s148, %s125
    %s158 = scalar_select %p157, 1, 0
    %s159 = sadd.s32 %s156, %s158
    %p160 = scmp.ge.f32.partialorder %s148, %s126
    %s161 = scalar_select %p160, 1, 0
    %s162 = sadd.s32 %s159, %s161
    %p163 = scmp.ne.s32.totalorder %s95, %s162
    %s164 = scalar_select %p163, %s95, %s121
    %s165 = scalar_lea.smem [#allocation9], 2
    %166 = sst [smem:[%s165]] %s162
    %s167 = scalar_lea.smem [#allocation9], 3
    %168 = sst [smem:[%s167]] %s164
    %s169 = sld [smem:[#allocation7 + $0x2]]
    %p170 = scmp.ge.f32.partialorder %s169, %s122
    %s171 = scalar_select %p170, 1, 0
    %p172 = scmp.ge.f32.partialorder %s169, %s123
    %s173 = scalar_select %p172, 1, 0
    %s174 = sadd.s32 %s171, %s173
    %p175 = scmp.ge.f32.partialorder %s169, %s124
    %s176 = scalar_select %p175, 1, 0
    %s177 = sadd.s32 %s174, %s176
    %p178 = scmp.ge.f32.partialorder %s169, %s125
    %s179 = scalar_select %p178, 1, 0
    %s180 = sadd.s32 %s177, %s179
    %p181 = scmp.ge.f32.partialorder %s169, %s126
    %s182 = scalar_select %p181, 1, 0
    %s183 = sadd.s32 %s180, %s182
    %p184 = scmp.ne.s32.totalorder %s95, %s183
    %s185 = scalar_select %p184, %s95, %s121
    %s186 = scalar_lea.smem [#allocation9], 4
    %187 = sst [smem:[%s186]] %s183
    %s188 = scalar_lea.smem [#allocation9], 5
    %189 = sst [smem:[%s188]] %s185
    %s190 = sld [smem:[#allocation7 + $0x3]]
    %p191 = scmp.ge.f32.partialorder %s190, %s122
    %s192 = scalar_select %p191, 1, 0
    %p193 = scmp.ge.f32.partialorder %s190, %s123
    %s194 = scalar_select %p193, 1, 0
    %s195 = sadd.s32 %s192, %s194
    %p196 = scmp.ge.f32.partialorder %s190, %s124
    %s197 = scalar_select %p196, 1, 0
    %s198 = sadd.s32 %s195, %s197
    %p199 = scmp.ge.f32.partialorder %s190, %s125
    %s200 = scalar_select %p199, 1, 0
    %s201 = sadd.s32 %s198, %s200
    %p202 = scmp.ge.f32.partialorder %s190, %s126
    %s203 = scalar_select %p202, 1, 0
    %s204 = sadd.s32 %s201, %s203
    %p205 = scmp.ne.s32.totalorder %s95, %s204
    %s206 = scalar_select %p205, %s95, %s121
    %s207 = scalar_lea.smem [#allocation9], 6
    %208 = sst [smem:[%s207]] %s204
    %s209 = scalar_lea.smem [#allocation9], 7
    %210 = sst [smem:[%s209]] %s206
    %s211 = sld [smem:[#allocation7 + $0x4]]
    %p212 = scmp.ge.f32.partialorder %s211, %s122
    %s213 = scalar_select %p212, 1, 0
    %p214 = scmp.ge.f32.partialorder %s211, %s123
    %s215 = scalar_select %p214, 1, 0
    %s216 = sadd.s32 %s213, %s215
    %p217 = scmp.ge.f32.partialorder %s211, %s124
    %s218 = scalar_select %p217, 1, 0
    %s219 = sadd.s32 %s216, %s218
    %p220 = scmp.ge.f32.partialorder %s211, %s125
    %s221 = scalar_select %p220, 1, 0
    %s222 = sadd.s32 %s219, %s221
    %p223 = scmp.ge.f32.partialorder %s211, %s126
    %s224 = scalar_select %p223, 1, 0
    %s225 = sadd.s32 %s222, %s224
    %p226 = scmp.ne.s32.totalorder %s95, %s225
    %s227 = scalar_select %p226, %s95, %s121
    %s228 = scalar_lea.smem [#allocation9], 8
    %229 = sst [smem:[%s228]] %s225
    %s230 = scalar_lea.smem [#allocation9], 9
    %231 = sst [smem:[%s230]] %s227
    %s232 = sld [smem:[#allocation7 + $0x5]]
    %p233 = scmp.ge.f32.partialorder %s232, %s122
    %s234 = scalar_select %p233, 1, 0
    %p235 = scmp.ge.f32.partialorder %s232, %s123
    %s236 = scalar_select %p235, 1, 0
    %s237 = sadd.s32 %s234, %s236
    %p238 = scmp.ge.f32.partialorder %s232, %s124
    %s239 = scalar_select %p238, 1, 0
    %s240 = sadd.s32 %s237, %s239
    %p241 = scmp.ge.f32.partialorder %s232, %s125
    %s242 = scalar_select %p241, 1, 0
    %s243 = sadd.s32 %s240, %s242
    %p244 = scmp.ge.f32.partialorder %s232, %s126
    %s245 = scalar_select %p244, 1, 0
    %s246 = sadd.s32 %s243, %s245
    %p247 = scmp.ne.s32.totalorder %s95, %s246
    %s248 = scalar_select %p247, %s95, %s121
    %s249 = scalar_lea.smem [#allocation9], 10
    %250 = sst [smem:[%s249]] %s246
    %s251 = scalar_lea.smem [#allocation9], 11
    %252 = sst [smem:[%s251]] %s248
    %s253 = sld [smem:[#allocation7 + $0x6]]
    %p254 = scmp.ge.f32.partialorder %s253, %s122
    %s255 = scalar_select %p254, 1, 0
    %p256 = scmp.ge.f32.partialorder %s253, %s123
    %s257 = scalar_select %p256, 1, 0
    %s258 = sadd.s32 %s255, %s257
    %p259 = scmp.ge.f32.partialorder %s253, %s124
    %s260 = scalar_select %p259, 1, 0
    %s261 = sadd.s32 %s258, %s260
    %p262 = scmp.ge.f32.partialorder %s253, %s125
    %s263 = scalar_select %p262, 1, 0
    %s264 = sadd.s32 %s261, %s263
    %p265 = scmp.ge.f32.partialorder %s253, %s126
    %s266 = scalar_select %p265, 1, 0
    %s267 = sadd.s32 %s264, %s266
    %p268 = scmp.ne.s32.totalorder %s95, %s267
    %s269 = scalar_select %p268, %s95, %s121
    %s270 = scalar_lea.smem [#allocation9], 12
    %271 = sst [smem:[%s270]] %s267
    %s272 = scalar_lea.smem [#allocation9], 13
    %273 = sst [smem:[%s272]] %s269
    %s274 = sld [smem:[#allocation7 + $0x7]]
    %p275 = scmp.ge.f32.partialorder %s274, %s122
    %s276 = scalar_select %p275, 1, 0
    %p277 = scmp.ge.f32.partialorder %s274, %s123
    %s278 = scalar_select %p277, 1, 0
    %s279 = sadd.s32 %s276, %s278
    %p280 = scmp.ge.f32.partialorder %s274, %s124
    %s281 = scalar_select %p280, 1, 0
    %s282 = sadd.s32 %s279, %s281
    %p283 = scmp.ge.f32.partialorder %s274, %s125
    %s284 = scalar_select %p283, 1, 0
    %s285 = sadd.s32 %s282, %s284
    %p286 = scmp.ge.f32.partialorder %s274, %s126
    %s287 = scalar_select %p286, 1, 0
    %s288 = sadd.s32 %s285, %s287
    %p289 = scmp.ne.s32.totalorder %s95, %s288
    %s290 = scalar_select %p289, %s95, %s121
    %s291 = scalar_lea.smem [#allocation9], 14
    %292 = sst [smem:[%s291]] %s288
    %s293 = scalar_lea.smem [#allocation9], 15
    %294 = sst [smem:[%s293]] %s290
    // Predicated region
    $region26: #{tpu_custom_call.1} parent=1 // pred_check
      _
    $region27: #{tpu_custom_call.1} parent=1 // pred_check_branch
      %296 = sbr.rel (0) target = $region29
    $region28: #{tpu_custom_call.1} parent=1 // pred_region
      %s298 = ssub.s32 16, 16
      %299 = vsyncadd [#allocation4], %s298
      %302 = dma.smem_to_hbm [#allocation9], 16, %s3, [#allocation4]
    $region29: #{tpu_custom_call.1} parent=1 // pred_fallthru
      _
    // Predicated region
    $region30: #{tpu_custom_call.1} parent=1 // pred_check
      _
    $region31: #{tpu_custom_call.1} parent=1 // pred_check_branch
      %304 = sbr.rel (0) target = $region33
    $region32: #{tpu_custom_call.1} parent=1 // pred_region
      %305 = dma.done [#allocation4], 16
    $region33: #{tpu_custom_call.1} parent=1 // pred_fallthru
      _
    %306 = sfence
    %307 = vsyncpa [#allocation3], 1
    %308 = vsyncpa [#allocation4], 1
    %309 = vsyncpa [#allocation5], 1
    %310 = vsyncpa [#allocation8], 1

</llo_original>
